<compile_context>
chip_gen: v5e
topology: v5e:2x2
jax: 0.10.0
libtpu: 0.0.40
codegen_flags: <defaults>
</compile_context>

<pallas_src>
import jax
import jax.numpy as jnp
from jax.experimental import pallas as pl
from jax.experimental.pallas import tpu as pltpu

BN_EPS = 1e-5
LANE = 128


def _round_up(n, m):
    return (n + m - 1) // m * m


def _pad_axis(a, target, axis):
    pad = target - a.shape[axis]
    if pad <= 0:
        return a
    widths = [(0, 0)] * a.ndim
    widths[axis] = (0, pad)
    return jnp.pad(a, widths)


def _relu_bn(h, gamma, beta):
    """ReLU then training-mode BatchNorm1d with a folded affine.

    Single reduction pass over the batch axis (sublanes): var = E[h^2] - E[h]^2
    (clamped at 0), scale = gamma * rsqrt(var + eps), shift = beta - mean*scale.
    Used both inside the Pallas kernel and in the JAX mirror reference.
    """
    h = jnp.maximum(h, 0.0)
    mean = jnp.mean(h, axis=0, keepdims=True)
    var = jnp.maximum(jnp.mean(h * h, axis=0, keepdims=True) - mean * mean, 0.0)
    scale = gamma * jax.lax.rsqrt(var + BN_EPS)
    shift = beta - mean * scale
    return h * scale + shift


def mlp_decoder_kernel(
    x_ref,
    w1_ref, b1_ref, g1_ref, be1_ref,
    w2_ref, b2_ref, g2_ref, be2_ref,
    w3_ref, b3_ref, g3_ref, be3_ref,
    w4_ref, b4_ref,
    o_ref,
):
    # fc1 -> ReLU -> bn1   (bf16 MXU matmul, f32 accumulate, f32 elementwise)
    x = x_ref[...]                                                    # bf16
    h = jnp.dot(x, w1_ref[...], preferred_element_type=jnp.float32) + b1_ref[...]
    h = _relu_bn(h, g1_ref[...], be1_ref[...])

    # fc2 -> ReLU -> bn2
    h = jnp.dot(h.astype(jnp.bfloat16), w2_ref[...],
                preferred_element_type=jnp.float32) + b2_ref[...]
    h = _relu_bn(h, g2_ref[...], be2_ref[...])

    # fc3 -> ReLU -> bn3
    h = jnp.dot(h.astype(jnp.bfloat16), w3_ref[...],
                preferred_element_type=jnp.float32) + b3_ref[...]
    h = _relu_bn(h, g3_ref[...], be3_ref[...])

    # fc4 — output dim zero-padded to 128 lanes -> lane-dense unmasked store.
    y = jnp.dot(h.astype(jnp.bfloat16), w4_ref[...],
                preferred_element_type=jnp.float32) + b4_ref[...]
    o_ref[...] = y


def mlp_decoder(x, params):
    """x: (batch, in_dim) f32.  params: flat tuple of f32 weight arrays
    (weights stored as (in_features, out_features); biases / bn params (1, F))."""
    (w1, b1, g1, be1, w2, b2, g2, be2, w3, b3, g3, be3, w4, b4) = params
    n = x.shape[0]
    in_dim, hidden = w1.shape
    out_dim = w3.shape[1]
    binary = w4.shape[1]

    in_p = _round_up(in_dim, LANE)
    hid_p = _round_up(hidden, LANE)
    out_p = _round_up(out_dim, LANE)
    bin_p = _round_up(binary, LANE)

    def pad_w(w, rp, cp):  # zero-pad weight to (rp, cp), cast to bf16
        return _pad_axis(_pad_axis(w, rp, 0), cp, 1).astype(jnp.bfloat16)

    def pad_v(v, cp):      # zero-pad (1, F) vectors, keep f32
        return _pad_axis(v, cp, 1).astype(jnp.float32)

    args = (
        _pad_axis(x, in_p, 1).astype(jnp.bfloat16),
        pad_w(w1, in_p, hid_p), pad_v(b1, hid_p), pad_v(g1, hid_p), pad_v(be1, hid_p),
        pad_w(w2, hid_p, hid_p), pad_v(b2, hid_p), pad_v(g2, hid_p), pad_v(be2, hid_p),
        pad_w(w3, hid_p, out_p), pad_v(b3, out_p), pad_v(g3, out_p), pad_v(be3, out_p),
        pad_w(w4, out_p, bin_p), pad_v(b4, bin_p),
    )

    # Size the scoped-VMEM limit from the real (padded) footprint, with headroom.
    out_bytes = n * bin_p * 4
    total_bytes = sum(int(a.size) * a.dtype.itemsize for a in args) + out_bytes
    vmem_limit = int(min(max(4 << 20, 4 * total_bytes), 96 << 20))

    vmem = pl.BlockSpec(memory_space=pltpu.MemorySpace.VMEM)
    y_pad = pl.pallas_call(
        mlp_decoder_kernel,
        out_shape=jax.ShapeDtypeStruct((n, bin_p), jnp.float32),
        in_specs=[vmem] * len(args),
        out_specs=vmem,
        compiler_params=pltpu.CompilerParams(vmem_limit_bytes=vmem_limit),
    )(*args)

    # TODO(synk): if batch / hidden dims grow to the hundreds+, add a batch grid
    # with resident weights (and on v7x a 'parallel' axis for the 2nd TC); that
    # requires a two-pass sum/sumsq BN-stat accumulation (or eval-mode BN) so
    # statistics still cover the full batch.  This single-shot call keeps exact
    # full-batch BN semantics at the current sizes.
    return y_pad[:, :binary]


def init_params(key, in_dim, hidden_dim, out_dim, binary=1):
    """Deterministic init mimicking nn.Linear defaults (U[-1/sqrt(fan_in), ...]).
    Weights stored as (in_features, out_features); biases / bn params as (1, F)."""
    def linear(key, fan_in, fan_out):
        kw, kb = jax.random.split(key)
        bound = 1.0 / jnp.sqrt(jnp.float32(fan_in))
        w = jax.random.uniform(kw, (fan_in, fan_out), jnp.float32, -bound, bound)
        b = jax.random.uniform(kb, (1, fan_out), jnp.float32, -bound, bound)
        return w, b

    k1, k2, k3, k4 = jax.random.split(key, 4)
    w1, b1 = linear(k1, in_dim, hidden_dim)
    w2, b2 = linear(k2, hidden_dim, hidden_dim)
    w3, b3 = linear(k3, hidden_dim, out_dim)
    w4, b4 = linear(k4, out_dim, binary)

    g1, be1 = jnp.ones((1, hidden_dim), jnp.float32), jnp.zeros((1, hidden_dim), jnp.float32)
    g2, be2 = jnp.ones((1, hidden_dim), jnp.float32), jnp.zeros((1, hidden_dim), jnp.float32)
    g3, be3 = jnp.ones((1, out_dim), jnp.float32), jnp.zeros((1, out_dim), jnp.float32)

    return (w1, b1, g1, be1,
            w2, b2, g2, be2,
            w3, b3, g3, be3,
            w4, b4)


def _ref_layer_bf16(h, w, b):
    # Mirror of the kernel's matmul: bf16 operands, f32 accumulation.
    return jnp.dot(h.astype(jnp.bfloat16), w.astype(jnp.bfloat16),
                   preferred_element_type=jnp.float32) + b


def mlp_decoder_ref_bf16(x, params):
    """Pure-JAX mirror of the kernel math (bf16 matmuls, f32 accumulate, folded BN)."""
    (w1, b1, g1, be1, w2, b2, g2, be2, w3, b3, g3, be3, w4, b4) = params
    h = _relu_bn(_ref_layer_bf16(x, w1, b1), g1, be1)
    h = _relu_bn(_ref_layer_bf16(h, w2, b2), g2, be2)
    h = _relu_bn(_ref_layer_bf16(h, w3, b3), g3, be3)
    return _ref_layer_bf16(h, w4, b4)


def _bn_f32(h, gamma, beta):
    mean = jnp.mean(h, axis=0, keepdims=True)
    var = jnp.mean((h - mean) * (h - mean), axis=0, keepdims=True)
    return (h - mean) * jax.lax.rsqrt(var + BN_EPS) * gamma + beta


def mlp_decoder_ref_f32(x, params):
    """Full-precision reference matching the PyTorch module (training-mode BN)."""
    (w1, b1, g1, be1, w2, b2, g2, be2, w3, b3, g3, be3, w4, b4) = params
    h = _bn_f32(jnp.maximum(x @ w1 + b1, 0.0), g1, be1)
    h = _bn_f32(jnp.maximum(h @ w2 + b2, 0.0), g2, be2)
    h = _bn_f32(jnp.maximum(h @ w3 + b3, 0.0), g3, be3)
    return h @ w4 + b4


if __name__ == "__main__":
    batch, in_dim, hidden_dim, out_dim, binary = 8, 16, 32, 16, 1

    key = jax.random.PRNGKey(0)
    kx, kp = jax.random.split(key)
    x = jax.random.normal(kx, (batch, in_dim), jnp.float32)
    params = init_params(kp, in_dim, hidden_dim, out_dim, binary)

    out = mlp_decoder(x, params)
    out = jax.block_until_ready(out)
    assert out.shape == (batch, binary)

    # Tight check vs a pure-JAX mirror of the kernel math (bf16 matmul, f32 acc).
    ref_bf16 = mlp_decoder_ref_bf16(x, params)
    assert jnp.allclose(out, ref_bf16, atol=1e-3, rtol=1e-3), "mismatch vs bf16 mirror"

    # Loose sanity check vs the full-f32 PyTorch-equivalent reference
    # (bf16 matmul operands loosen the tolerance).
    ref_f32 = mlp_decoder_ref_f32(x, params)
    assert jnp.allclose(out, ref_f32, atol=2e-1, rtol=2e-1), "mismatch vs f32 reference"

    print("KERNEL_OK")
</pallas_src>

<mosaic_0001>
module attributes {stable_mosaic.version = 11 : i64} {
  func.func @mlp_decoder_kernel(%arg0: memref<8x128xbf16, #tpu.memory_space<vmem>>, %arg1: memref<128x128xbf16, #tpu.memory_space<vmem>>, %arg2: memref<1x128xf32, #tpu.memory_space<vmem>>, %arg3: memref<1x128xf32, #tpu.memory_space<vmem>>, %arg4: memref<1x128xf32, #tpu.memory_space<vmem>>, %arg5: memref<128x128xbf16, #tpu.memory_space<vmem>>, %arg6: memref<1x128xf32, #tpu.memory_space<vmem>>, %arg7: memref<1x128xf32, #tpu.memory_space<vmem>>, %arg8: memref<1x128xf32, #tpu.memory_space<vmem>>, %arg9: memref<128x128xbf16, #tpu.memory_space<vmem>>, %arg10: memref<1x128xf32, #tpu.memory_space<vmem>>, %arg11: memref<1x128xf32, #tpu.memory_space<vmem>>, %arg12: memref<1x128xf32, #tpu.memory_space<vmem>>, %arg13: memref<128x128xbf16, #tpu.memory_space<vmem>>, %arg14: memref<1x128xf32, #tpu.memory_space<vmem>>, %arg15: memref<8x128xf32, #tpu.memory_space<vmem>>) attributes {dimension_semantics = [], scalar_prefetch = 0 : i64, scratch_operands = 0 : i64, tpu.core_type = #tpu.core_type<tc>} {
    %c0 = arith.constant 0 : index
    %c0_0 = arith.constant 0 : index
    %0 = vector.load %arg0[%c0, %c0_0] : memref<8x128xbf16, #tpu.memory_space<vmem>>, vector<8x128xbf16>
    %c0_1 = arith.constant 0 : index
    %c0_2 = arith.constant 0 : index
    %1 = vector.load %arg1[%c0_1, %c0_2] : memref<128x128xbf16, #tpu.memory_space<vmem>>, vector<128x128xbf16>
    %cst = arith.constant dense<0.000000e+00> : vector<8x128xf32>
    %2 = tpu.matmul %0, %1, %cst {dimension_numbers = #tpu.dot_dimension_numbers<[1], [0], [0], [1], [0, 0, 1, 1], [], []>} : vector<8x128xbf16>, vector<128x128xbf16>, vector<8x128xf32> -> vector<8x128xf32>
    %c0_3 = arith.constant 0 : index
    %c0_4 = arith.constant 0 : index
    %3 = vector.load %arg2[%c0_3, %c0_4] : memref<1x128xf32, #tpu.memory_space<vmem>>, vector<1x128xf32>
    %4 = vector.broadcast %3 : vector<1x128xf32> to vector<8x128xf32>
    %5 = arith.addf %2, %4 : vector<8x128xf32>
    %c0_5 = arith.constant 0 : index
    %c0_6 = arith.constant 0 : index
    %6 = vector.load %arg3[%c0_5, %c0_6] : memref<1x128xf32, #tpu.memory_space<vmem>>, vector<1x128xf32>
    %c0_7 = arith.constant 0 : index
    %c0_8 = arith.constant 0 : index
    %7 = vector.load %arg4[%c0_7, %c0_8] : memref<1x128xf32, #tpu.memory_space<vmem>>, vector<1x128xf32>
    %cst_9 = arith.constant 0.000000e+00 : f32
    %8 = vector.broadcast %cst_9 : f32 to vector<8x128xf32>
    %9 = arith.maximumf %5, %8 : vector<8x128xf32>
    %cst_10 = arith.constant dense<0.000000e+00> : vector<128xf32>
    %10 = vector.multi_reduction <add>, %9, %cst_10 [0] : vector<8x128xf32> to vector<128xf32>
    %11 = vector.shape_cast %10 : vector<128xf32> to vector<1x128xf32>
    %cst_11 = arith.constant 8.000000e+00 : f32
    %12 = vector.broadcast %cst_11 : f32 to vector<1x128xf32>
    %13 = arith.divf %11, %12 : vector<1x128xf32>
    %14 = arith.mulf %9, %9 : vector<8x128xf32>
    %cst_12 = arith.constant dense<0.000000e+00> : vector<128xf32>
    %15 = vector.multi_reduction <add>, %14, %cst_12 [0] : vector<8x128xf32> to vector<128xf32>
    %16 = vector.shape_cast %15 : vector<128xf32> to vector<1x128xf32>
    %cst_13 = arith.constant 8.000000e+00 : f32
    %17 = vector.broadcast %cst_13 : f32 to vector<1x128xf32>
    %18 = arith.divf %16, %17 : vector<1x128xf32>
    %19 = arith.mulf %13, %13 : vector<1x128xf32>
    %20 = arith.subf %18, %19 : vector<1x128xf32>
    %cst_14 = arith.constant 0.000000e+00 : f32
    %21 = vector.broadcast %cst_14 : f32 to vector<1x128xf32>
    %22 = arith.maximumf %20, %21 : vector<1x128xf32>
    %cst_15 = arith.constant 9.99999974E-6 : f32
    %23 = vector.broadcast %cst_15 : f32 to vector<1x128xf32>
    %24 = arith.addf %22, %23 : vector<1x128xf32>
    %25 = math.rsqrt %24 : vector<1x128xf32>
    %26 = arith.mulf %6, %25 : vector<1x128xf32>
    %27 = arith.mulf %13, %26 : vector<1x128xf32>
    %28 = arith.subf %7, %27 : vector<1x128xf32>
    %29 = vector.broadcast %26 : vector<1x128xf32> to vector<8x128xf32>
    %30 = arith.mulf %9, %29 : vector<8x128xf32>
    %31 = vector.broadcast %28 : vector<1x128xf32> to vector<8x128xf32>
    %32 = arith.addf %30, %31 : vector<8x128xf32>
    %33 = arith.truncf %32 : vector<8x128xf32> to vector<8x128xbf16>
    %c0_16 = arith.constant 0 : index
    %c0_17 = arith.constant 0 : index
    %34 = vector.load %arg5[%c0_16, %c0_17] : memref<128x128xbf16, #tpu.memory_space<vmem>>, vector<128x128xbf16>
    %cst_18 = arith.constant dense<0.000000e+00> : vector<8x128xf32>
    %35 = tpu.matmul %33, %34, %cst_18 {dimension_numbers = #tpu.dot_dimension_numbers<[1], [0], [0], [1], [0, 0, 1, 1], [], []>} : vector<8x128xbf16>, vector<128x128xbf16>, vector<8x128xf32> -> vector<8x128xf32>
    %c0_19 = arith.constant 0 : index
    %c0_20 = arith.constant 0 : index
    %36 = vector.load %arg6[%c0_19, %c0_20] : memref<1x128xf32, #tpu.memory_space<vmem>>, vector<1x128xf32>
    %37 = vector.broadcast %36 : vector<1x128xf32> to vector<8x128xf32>
    %38 = arith.addf %35, %37 : vector<8x128xf32>
    %c0_21 = arith.constant 0 : index
    %c0_22 = arith.constant 0 : index
    %39 = vector.load %arg7[%c0_21, %c0_22] : memref<1x128xf32, #tpu.memory_space<vmem>>, vector<1x128xf32>
    %c0_23 = arith.constant 0 : index
    %c0_24 = arith.constant 0 : index
    %40 = vector.load %arg8[%c0_23, %c0_24] : memref<1x128xf32, #tpu.memory_space<vmem>>, vector<1x128xf32>
    %cst_25 = arith.constant 0.000000e+00 : f32
    %41 = vector.broadcast %cst_25 : f32 to vector<8x128xf32>
    %42 = arith.maximumf %38, %41 : vector<8x128xf32>
    %cst_26 = arith.constant dense<0.000000e+00> : vector<128xf32>
    %43 = vector.multi_reduction <add>, %42, %cst_26 [0] : vector<8x128xf32> to vector<128xf32>
    %44 = vector.shape_cast %43 : vector<128xf32> to vector<1x128xf32>
    %cst_27 = arith.constant 8.000000e+00 : f32
    %45 = vector.broadcast %cst_27 : f32 to vector<1x128xf32>
    %46 = arith.divf %44, %45 : vector<1x128xf32>
    %47 = arith.mulf %42, %42 : vector<8x128xf32>
    %cst_28 = arith.constant dense<0.000000e+00> : vector<128xf32>
    %48 = vector.multi_reduction <add>, %47, %cst_28 [0] : vector<8x128xf32> to vector<128xf32>
    %49 = vector.shape_cast %48 : vector<128xf32> to vector<1x128xf32>
    %cst_29 = arith.constant 8.000000e+00 : f32
    %50 = vector.broadcast %cst_29 : f32 to vector<1x128xf32>
    %51 = arith.divf %49, %50 : vector<1x128xf32>
    %52 = arith.mulf %46, %46 : vector<1x128xf32>
    %53 = arith.subf %51, %52 : vector<1x128xf32>
    %cst_30 = arith.constant 0.000000e+00 : f32
    %54 = vector.broadcast %cst_30 : f32 to vector<1x128xf32>
    %55 = arith.maximumf %53, %54 : vector<1x128xf32>
    %cst_31 = arith.constant 9.99999974E-6 : f32
    %56 = vector.broadcast %cst_31 : f32 to vector<1x128xf32>
    %57 = arith.addf %55, %56 : vector<1x128xf32>
    %58 = math.rsqrt %57 : vector<1x128xf32>
    %59 = arith.mulf %39, %58 : vector<1x128xf32>
    %60 = arith.mulf %46, %59 : vector<1x128xf32>
    %61 = arith.subf %40, %60 : vector<1x128xf32>
    %62 = vector.broadcast %59 : vector<1x128xf32> to vector<8x128xf32>
    %63 = arith.mulf %42, %62 : vector<8x128xf32>
    %64 = vector.broadcast %61 : vector<1x128xf32> to vector<8x128xf32>
    %65 = arith.addf %63, %64 : vector<8x128xf32>
    %66 = arith.truncf %65 : vector<8x128xf32> to vector<8x128xbf16>
    %c0_32 = arith.constant 0 : index
    %c0_33 = arith.constant 0 : index
    %67 = vector.load %arg9[%c0_32, %c0_33] : memref<128x128xbf16, #tpu.memory_space<vmem>>, vector<128x128xbf16>
    %cst_34 = arith.constant dense<0.000000e+00> : vector<8x128xf32>
    %68 = tpu.matmul %66, %67, %cst_34 {dimension_numbers = #tpu.dot_dimension_numbers<[1], [0], [0], [1], [0, 0, 1, 1], [], []>} : vector<8x128xbf16>, vector<128x128xbf16>, vector<8x128xf32> -> vector<8x128xf32>
    %c0_35 = arith.constant 0 : index
    %c0_36 = arith.constant 0 : index
    %69 = vector.load %arg10[%c0_35, %c0_36] : memref<1x128xf32, #tpu.memory_space<vmem>>, vector<1x128xf32>
    %70 = vector.broadcast %69 : vector<1x128xf32> to vector<8x128xf32>
    %71 = arith.addf %68, %70 : vector<8x128xf32>
    %c0_37 = arith.constant 0 : index
    %c0_38 = arith.constant 0 : index
    %72 = vector.load %arg11[%c0_37, %c0_38] : memref<1x128xf32, #tpu.memory_space<vmem>>, vector<1x128xf32>
    %c0_39 = arith.constant 0 : index
    %c0_40 = arith.constant 0 : index
    %73 = vector.load %arg12[%c0_39, %c0_40] : memref<1x128xf32, #tpu.memory_space<vmem>>, vector<1x128xf32>
    %cst_41 = arith.constant 0.000000e+00 : f32
    %74 = vector.broadcast %cst_41 : f32 to vector<8x128xf32>
    %75 = arith.maximumf %71, %74 : vector<8x128xf32>
    %cst_42 = arith.constant dense<0.000000e+00> : vector<128xf32>
    %76 = vector.multi_reduction <add>, %75, %cst_42 [0] : vector<8x128xf32> to vector<128xf32>
    %77 = vector.shape_cast %76 : vector<128xf32> to vector<1x128xf32>
    %cst_43 = arith.constant 8.000000e+00 : f32
    %78 = vector.broadcast %cst_43 : f32 to vector<1x128xf32>
    %79 = arith.divf %77, %78 : vector<1x128xf32>
    %80 = arith.mulf %75, %75 : vector<8x128xf32>
    %cst_44 = arith.constant dense<0.000000e+00> : vector<128xf32>
    %81 = vector.multi_reduction <add>, %80, %cst_44 [0] : vector<8x128xf32> to vector<128xf32>
    %82 = vector.shape_cast %81 : vector<128xf32> to vector<1x128xf32>
    %cst_45 = arith.constant 8.000000e+00 : f32
    %83 = vector.broadcast %cst_45 : f32 to vector<1x128xf32>
    %84 = arith.divf %82, %83 : vector<1x128xf32>
    %85 = arith.mulf %79, %79 : vector<1x128xf32>
    %86 = arith.subf %84, %85 : vector<1x128xf32>
    %cst_46 = arith.constant 0.000000e+00 : f32
    %87 = vector.broadcast %cst_46 : f32 to vector<1x128xf32>
    %88 = arith.maximumf %86, %87 : vector<1x128xf32>
    %cst_47 = arith.constant 9.99999974E-6 : f32
    %89 = vector.broadcast %cst_47 : f32 to vector<1x128xf32>
    %90 = arith.addf %88, %89 : vector<1x128xf32>
    %91 = math.rsqrt %90 : vector<1x128xf32>
    %92 = arith.mulf %72, %91 : vector<1x128xf32>
    %93 = arith.mulf %79, %92 : vector<1x128xf32>
    %94 = arith.subf %73, %93 : vector<1x128xf32>
    %95 = vector.broadcast %92 : vector<1x128xf32> to vector<8x128xf32>
    %96 = arith.mulf %75, %95 : vector<8x128xf32>
    %97 = vector.broadcast %94 : vector<1x128xf32> to vector<8x128xf32>
    %98 = arith.addf %96, %97 : vector<8x128xf32>
    %99 = arith.truncf %98 : vector<8x128xf32> to vector<8x128xbf16>
    %c0_48 = arith.constant 0 : index
    %c0_49 = arith.constant 0 : index
    %100 = vector.load %arg13[%c0_48, %c0_49] : memref<128x128xbf16, #tpu.memory_space<vmem>>, vector<128x128xbf16>
    %cst_50 = arith.constant dense<0.000000e+00> : vector<8x128xf32>
    %101 = tpu.matmul %99, %100, %cst_50 {dimension_numbers = #tpu.dot_dimension_numbers<[1], [0], [0], [1], [0, 0, 1, 1], [], []>} : vector<8x128xbf16>, vector<128x128xbf16>, vector<8x128xf32> -> vector<8x128xf32>
    %c0_51 = arith.constant 0 : index
    %c0_52 = arith.constant 0 : index
    %102 = vector.load %arg14[%c0_51, %c0_52] : memref<1x128xf32, #tpu.memory_space<vmem>>, vector<1x128xf32>
    %103 = vector.broadcast %102 : vector<1x128xf32> to vector<8x128xf32>
    %104 = arith.addf %101, %103 : vector<8x128xf32>
    %c0_53 = arith.constant 0 : index
    %c0_54 = arith.constant 0 : index
    %105 = vector.load %arg15[%c0_53, %c0_54] : memref<8x128xf32, #tpu.memory_space<vmem>>, vector<8x128xf32>
    tpu.vector_store %arg15[%c0_53, %c0_54], %104 {strides = array<i32>} : memref<8x128xf32, #tpu.memory_space<vmem>>, vector<8x128xf32>,
    return
  }
}

</mosaic_0001>

<llo_original>
// kernel: tpu_custom_call.1
$region0: #{tpu_custom_call.1}
  #allocation0 [shape = 'u32[]', space=smem, size = 0x4, offset = 0x4, fixed_abs, tag = 'smem constant byte address 0x4 - core index']
  #allocation1 [shape = 'u32[72,128]{1,0:T(1,128)}', space=vmem, size = 0x9000, scoped, tag = 'internal scratch']
  %s0 = inlined_call_operand.hbm [shape: bf16[8,128], index: 0, kind: input, shape index: {}]
  %s1 = inlined_call_operand.hbm [shape: bf16[128,128], index: 1, kind: input, shape index: {}]
  %s2 = inlined_call_operand.vmem [shape: f32[1,128], index: 2, kind: input, shape index: {}]
  %s3 = inlined_call_operand.vmem [shape: f32[1,128], index: 3, kind: input, shape index: {}]
  %s4 = inlined_call_operand.vmem [shape: f32[1,128], index: 4, kind: input, shape index: {}]
  %s5 = inlined_call_operand.hbm [shape: bf16[128,128], index: 5, kind: input, shape index: {}]
  %s6 = inlined_call_operand.vmem [shape: f32[1,128], index: 6, kind: input, shape index: {}]
  %s7 = inlined_call_operand.vmem [shape: f32[1,128], index: 7, kind: input, shape index: {}]
  %s8 = inlined_call_operand.vmem [shape: f32[1,128], index: 8, kind: input, shape index: {}]
  %s9 = inlined_call_operand.hbm [shape: bf16[128,128], index: 9, kind: input, shape index: {}]
  %s10 = inlined_call_operand.vmem [shape: f32[1,128], index: 10, kind: input, shape index: {}]
  %s11 = inlined_call_operand.vmem [shape: f32[1,128], index: 11, kind: input, shape index: {}]
  %s12 = inlined_call_operand.vmem [shape: f32[1,128], index: 12, kind: input, shape index: {}]
  %s13 = inlined_call_operand.hbm [shape: bf16[128,128], index: 13, kind: input, shape index: {}]
  %s14 = inlined_call_operand.vmem [shape: f32[1,128], index: 14, kind: input, shape index: {}]
  %s15 = inlined_call_operand.hbm [shape: f32[8,128], index: 15, kind: output, shape index: {}]
  %s16 = sld [smem:[#allocation0]]
  $region90: #{tpu_custom_call.1} parent=0
    _
  %s18 = ssub.s32 1, %s16
  %s19 = scalar_select 0, %s18, %s16
  $region1: #{tpu_custom_call.1} parent=0
    #allocation2 [shape = 'u8[2048]{0}', space=vmem, size = 0x800, scoped, tag = 'input window, operand 0, single buffered']
    #allocation3 [shape = 's32[1]{0}', space=sflag, size = 0x4, scoped, tag = 'scoped memory for tpu_custom_call.1']
    #allocation4 [shape = 's32[1]{0}', space=sflag, size = 0x4, scoped, tag = 'scoped memory for tpu_custom_call.1']
    #allocation5 [shape = 'u8[32768]{0}', space=vmem, size = 0x8000, scoped, tag = 'input window, operand 1, single buffered']
    #allocation6 [shape = 's32[1]{0}', space=sflag, size = 0x4, scoped, tag = 'scoped memory for tpu_custom_call.1']
    #allocation7 [shape = 'u8[32768]{0}', space=vmem, size = 0x8000, scoped, tag = 'input window, operand 5, single buffered']
    #allocation8 [shape = 'u8[32768]{0}', space=vmem, size = 0x8000, scoped, tag = 'input window, operand 9, single buffered']
    #allocation9 [shape = 's32[1]{0}', space=sflag, size = 0x4, scoped, tag = 'scoped memory for tpu_custom_call.1']
    #allocation10 [shape = 'u8[32768]{0}', space=vmem, size = 0x8000, scoped, tag = 'input window, operand 13, single buffered']
    #allocation11 [shape = 'u8[4096]{0}', space=vmem, size = 0x1000, scoped, tag = 'output window, operand 0, single buffered']
    %20 = vsyncpa [#allocation3], 0
    %21 = vsyncpa [#allocation6], 0
    %22 = vsyncpa [#allocation9], 0
    %23 = vsyncpa [#allocation4], 0
    // Predicated region
    $region2: #{tpu_custom_call.1} parent=1 // pred_check
      _
    $region3: #{tpu_custom_call.1} parent=1 // pred_check_branch
      %25 = sbr.rel (0) target = $region5
    $region4: #{tpu_custom_call.1} parent=1 // pred_region
      %27 = vsyncadd [#allocation3], 0
      %s29 = sshll.u32 %s0, 4
      %s30 = int_to_ptr.hbm [resolvable:$true] %s29
      %s31 = sshll.u32 [#allocation2], 4
      %s32 = int_to_ptr.vmem [resolvable:$true] %s31
      %34 = dma.hbm_to_vmem [thread:$0]  %s30, 64, %s32, [#allocation3]
    $region5: #{tpu_custom_call.1} parent=1 // pred_fallthru
      _
    // Predicated region
    $region6: #{tpu_custom_call.1} parent=1 // pred_check
      _
    $region7: #{tpu_custom_call.1} parent=1 // pred_check_branch
      %36 = sbr.rel (0) target = $region9
    $region8: #{tpu_custom_call.1} parent=1 // pred_region
      %38 = vsyncadd [#allocation6], 0
      %s39 = sshll.u32 %s1, 4
      %s40 = int_to_ptr.hbm [resolvable:$true] %s39
      %s41 = sshll.u32 [#allocation5], 4
      %s42 = int_to_ptr.vmem [resolvable:$true] %s41
      %47 = dma.hbm_to_vmem [thread:$0]  %s40, 1024, %s42, [#allocation6], 64, 64, 4
    $region9: #{tpu_custom_call.1} parent=1 // pred_fallthru
      _
    // Predicated region
    $region10: #{tpu_custom_call.1} parent=1 // pred_check
      _
    $region11: #{tpu_custom_call.1} parent=1 // pred_check_branch
      %49 = sbr.rel (0) target = $region13
    $region12: #{tpu_custom_call.1} parent=1 // pred_region
      _
    $region13: #{tpu_custom_call.1} parent=1 // pred_fallthru
      _
    // Predicated region
    $region14: #{tpu_custom_call.1} parent=1 // pred_check
      _
    $region15: #{tpu_custom_call.1} parent=1 // pred_check_branch
      %51 = sbr.rel (0) target = $region17
    $region16: #{tpu_custom_call.1} parent=1 // pred_region
      _
    $region17: #{tpu_custom_call.1} parent=1 // pred_fallthru
      _
    // Predicated region
    $region18: #{tpu_custom_call.1} parent=1 // pred_check
      _
    $region19: #{tpu_custom_call.1} parent=1 // pred_check_branch
      %53 = sbr.rel (0) target = $region21
    $region20: #{tpu_custom_call.1} parent=1 // pred_region
      _
    $region21: #{tpu_custom_call.1} parent=1 // pred_fallthru
      _
    // Predicated region
    $region22: #{tpu_custom_call.1} parent=1 // pred_check
      _
    $region23: #{tpu_custom_call.1} parent=1 // pred_check_branch
      %55 = sbr.rel (0) target = $region25
    $region24: #{tpu_custom_call.1} parent=1 // pred_region
      %57 = vsyncadd [#allocation6], 0
      %s58 = sshll.u32 %s5, 4
      %s59 = int_to_ptr.hbm [resolvable:$true] %s58
      %s60 = sshll.u32 [#allocation7], 4
      %s61 = int_to_ptr.vmem [resolvable:$true] %s60
      %66 = dma.hbm_to_vmem [thread:$0]  %s59, 1024, %s61, [#allocation6], 64, 64, 4
    $region25: #{tpu_custom_call.1} parent=1 // pred_fallthru
      _
    // Predicated region
    $region26: #{tpu_custom_call.1} parent=1 // pred_check
      _
    $region27: #{tpu_custom_call.1} parent=1 // pred_check_branch
      %68 = sbr.rel (0) target = $region29
    $region28: #{tpu_custom_call.1} parent=1 // pred_region
      _
    $region29: #{tpu_custom_call.1} parent=1 // pred_fallthru
      _
    // Predicated region
    $region30: #{tpu_custom_call.1} parent=1 // pred_check
      _
    $region31: #{tpu_custom_call.1} parent=1 // pred_check_branch
      %70 = sbr.rel (0) target = $region33
    $region32: #{tpu_custom_call.1} parent=1 // pred_region
      _
    $region33: #{tpu_custom_call.1} parent=1 // pred_fallthru
      _
    // Predicated region
    $region34: #{tpu_custom_call.1} parent=1 // pred_check
      _
    $region35: #{tpu_custom_call.1} parent=1 // pred_check_branch
      %72 = sbr.rel (0) target = $region37
    $region36: #{tpu_custom_call.1} parent=1 // pred_region
      _
    $region37: #{tpu_custom_call.1} parent=1 // pred_fallthru
      _
    // Predicated region
    $region38: #{tpu_custom_call.1} parent=1 // pred_check
      _
    $region39: #{tpu_custom_call.1} parent=1 // pred_check_branch
      %74 = sbr.rel (0) target = $region41
    $region40: #{tpu_custom_call.1} parent=1 // pred_region
      %76 = vsyncadd [#allocation9], 0
      %s77 = sshll.u32 %s9, 4
      %s78 = int_to_ptr.hbm [resolvable:$true] %s77
      %s79 = sshll.u32 [#allocation8], 4
      %s80 = int_to_ptr.vmem [resolvable:$true] %s79
      %85 = dma.hbm_to_vmem [thread:$0]  %s78, 1024, %s80, [#allocation9], 64, 64, 4
    $region41: #{tpu_custom_call.1} parent=1 // pred_fallthru
      _
    // Predicated region
    $region42: #{tpu_custom_call.1} parent=1 // pred_check
      _
    $region43: #{tpu_custom_call.1} parent=1 // pred_check_branch
      %87 = sbr.rel (0) target = $region45
    $region44: #{tpu_custom_call.1} parent=1 // pred_region
      _
    $region45: #{tpu_custom_call.1} parent=1 // pred_fallthru
      _
    // Predicated region
    $region46: #{tpu_custom_call.1} parent=1 // pred_check
      _
    $region47: #{tpu_custom_call.1} parent=1 // pred_check_branch
      %89 = sbr.rel (0) target = $region49
    $region48: #{tpu_custom_call.1} parent=1 // pred_region
      _
    $region49: #{tpu_custom_call.1} parent=1 // pred_fallthru
      _
    // Predicated region
    $region50: #{tpu_custom_call.1} parent=1 // pred_check
      _
    $region51: #{tpu_custom_call.1} parent=1 // pred_check_branch
      %91 = sbr.rel (0) target = $region53
    $region52: #{tpu_custom_call.1} parent=1 // pred_region
      _
    $region53: #{tpu_custom_call.1} parent=1 // pred_fallthru
      _
    // Predicated region
    $region54: #{tpu_custom_call.1} parent=1 // pred_check
      _
    $region55: #{tpu_custom_call.1} parent=1 // pred_check_branch
      %93 = sbr.rel (0) target = $region57
    $region56: #{tpu_custom_call.1} parent=1 // pred_region
      %95 = vsyncadd [#allocation9], 0
      %s96 = sshll.u32 %s13, 4
      %s97 = int_to_ptr.hbm [resolvable:$true] %s96
      %s98 = sshll.u32 [#allocation10], 4
      %s99 = int_to_ptr.vmem [resolvable:$true] %s98
      %104 = dma.hbm_to_vmem [thread:$0]  %s97, 1024, %s99, [#allocation9], 64, 64, 4
    $region57: #{tpu_custom_call.1} parent=1 // pred_fallthru
      _
    // Predicated region
    $region58: #{tpu_custom_call.1} parent=1 // pred_check
      _
    $region59: #{tpu_custom_call.1} parent=1 // pred_check_branch
      %106 = sbr.rel (0) target = $region61
    $region60: #{tpu_custom_call.1} parent=1 // pred_region
      _
    $region61: #{tpu_custom_call.1} parent=1 // pred_fallthru
      _
    // Predicated region
    $region62: #{tpu_custom_call.1} parent=1 // pred_check
      _
    $region63: #{tpu_custom_call.1} parent=1 // pred_check_branch
      %108 = sbr.rel (0) target = $region65
    $region64: #{tpu_custom_call.1} parent=1 // pred_region
      %110 = dma.done [#allocation3], 64
    $region65: #{tpu_custom_call.1} parent=1 // pred_fallthru
      _
    // Predicated region
    $region66: #{tpu_custom_call.1} parent=1 // pred_check
      _
    $region67: #{tpu_custom_call.1} parent=1 // pred_check_branch
      %112 = sbr.rel (0) target = $region69
    $region68: #{tpu_custom_call.1} parent=1 // pred_region
      %114 = dma.done [#allocation6], 1024
    $region69: #{tpu_custom_call.1} parent=1 // pred_fallthru
      _
    // Predicated region
    $region70: #{tpu_custom_call.1} parent=1 // pred_check
      _
    $region71: #{tpu_custom_call.1} parent=1 // pred_check_branch
      %116 = sbr.rel (0) target = $region73
    $region72: #{tpu_custom_call.1} parent=1 // pred_region
      %118 = dma.done [#allocation6], 1024
    $region73: #{tpu_custom_call.1} parent=1 // pred_fallthru
      _
    // Predicated region
    $region74: #{tpu_custom_call.1} parent=1 // pred_check
      _
    $region75: #{tpu_custom_call.1} parent=1 // pred_check_branch
      %120 = sbr.rel (0) target = $region77
    $region76: #{tpu_custom_call.1} parent=1 // pred_region
      %122 = dma.done [#allocation9], 1024
    $region77: #{tpu_custom_call.1} parent=1 // pred_fallthru
      _
    // Predicated region
    $region78: #{tpu_custom_call.1} parent=1 // pred_check
      _
    $region79: #{tpu_custom_call.1} parent=1 // pred_check_branch
      %124 = sbr.rel (0) target = $region81
    $region80: #{tpu_custom_call.1} parent=1 // pred_region
      %126 = dma.done [#allocation9], 1024
    $region81: #{tpu_custom_call.1} parent=1 // pred_fallthru
      _
    %v127 = vld [vmem:[#allocation2] sm:$0xf]
    %v128 = vld [vmem:[#allocation5] sm:$0xf]
    %v129 = vld [vmem:[#allocation5 + $0x4] sm:$0xf]
    %v130 = vld [vmem:[#allocation5 + $0x8] sm:$0xf]
    %v131 = vld [vmem:[#allocation5 + $0xc] sm:$0xf]
    %v132 = vld [vmem:[#allocation5 + $0x10] sm:$0xf]
    %v133 = vld [vmem:[#allocation5 + $0x14] sm:$0xf]
    %v134 = vld [vmem:[#allocation5 + $0x18] sm:$0xf]
    %v135 = vld [vmem:[#allocation5 + $0x1c] sm:$0xf]
    %v136 = vld [vmem:[#allocation5 + $0x20] sm:$0xf]
    %v137 = vld [vmem:[#allocation5 + $0x24] sm:$0xf]
    %v138 = vld [vmem:[#allocation5 + $0x28] sm:$0xf]
    %v139 = vld [vmem:[#allocation5 + $0x2c] sm:$0xf]
    %v140 = vld [vmem:[#allocation5 + $0x30] sm:$0xf]
    %v141 = vld [vmem:[#allocation5 + $0x34] sm:$0xf]
    %v142 = vld [vmem:[#allocation5 + $0x38] sm:$0xf]
    %v143 = vld [vmem:[#allocation5 + $0x3c] sm:$0xf]
    %v144 = vld [vmem:[%s2] sm:$0x1]
    %v146 = vperm.slane %v144, 0
    %v164 = vunpack.c.l.b16 %v128
    %v165 = vunpack.c.l.b16 %v129
    %v166 = vunpack.c.l.b16 %v130
    %v167 = vunpack.c.l.b16 %v131
    %v168 = vunpack.c.l.b16 %v132
    %v169 = vunpack.c.l.b16 %v133
    %v170 = vunpack.c.l.b16 %v134
    %v171 = vunpack.c.l.b16 %v135
    %v172 = vunpack.c.l.b16 %v136
    %v173 = vunpack.c.l.b16 %v137
    %v174 = vunpack.c.l.b16 %v138
    %v175 = vunpack.c.l.b16 %v139
    %v176 = vunpack.c.l.b16 %v140
    %v177 = vunpack.c.l.b16 %v141
    %v178 = vunpack.c.l.b16 %v142
    %v179 = vunpack.c.l.b16 %v143
    %v180 = vpack.c.b16 %v165, %v164
    %v181 = vpack.c.b16 %v167, %v166
    %v182 = vpack.c.b16 %v169, %v168
    %v183 = vpack.c.b16 %v171, %v170
    %v184 = vpack.c.b16 %v173, %v172
    %v185 = vpack.c.b16 %v175, %v174
    %v186 = vpack.c.b16 %v177, %v176
    %v187 = vpack.c.b16 %v179, %v178
    %196 = vmatpush.bf16.msra.mxu0 %v187
    %197 = vmatpush.bf16.msra.mxu0 %v186
    %198 = vmatpush.bf16.msra.mxu0 %v185
    %199 = vmatpush.bf16.msra.mxu0 %v184
    %200 = vmatpush.bf16.msra.mxu0 %v183
    %201 = vmatpush.bf16.msra.mxu0 %v182
    %202 = vmatpush.bf16.msra.mxu0 %v181
    %203 = vmatpush.bf16.msra.mxu0 %v180
    %204 = vmatmul.bf16.gmra.mxu0 %v127
    %v205 = vpop.f32.mrf.mxu0
    %v206 = vadd.f32 %v146, %v205
    %v207 = vpop.f32.mrf.mxu0
    %208 = vdwg.mxu0
    %v209 = vld [vmem:[%s3] sm:$0x1]
    %v210 = vld [vmem:[%s4] sm:$0x1]
    %v211 = vmax.f32 %v206, 0.0
    %v212 = vrot.slane %v211, 4
    %v213 = vadd.f32 %v211, %v212
    %v214 = vrot.slane %v213, 2
    %v215 = vadd.f32 %v213, %v214
    %v216 = vrot.slane %v215, 1
    %v217 = vadd.f32 %v215, %v216
    %v218 = vrcp.pop 8.0
    %v219 = vmul.f32 8.0, %v218
    %v220 = vsub.f32 1.0, %v219
    %v221 = vmul.f32 %v218, %v220
    %v222 = vadd.f32 %v218, %v221
    %vm223 = vweird.f32 %v218
    %v224 = vsel %vm223, %v218, %v222
    %v225 = vmul.f32 %v217, %v224
    %v226 = vmul.f32 %v211, %v211
    %v227 = vrot.slane %v226, 4
    %v228 = vadd.f32 %v226, %v227
    %v229 = vrot.slane %v228, 2
    %v230 = vadd.f32 %v228, %v229
    %v231 = vrot.slane %v230, 1
    %v232 = vadd.f32 %v230, %v231
    %v233 = vmul.f32 %v232, %v224
    %v234 = vmul.f32 %v225, %v225
    %v235 = vsub.f32 %v233, %v234
    %v236 = vmax.f32 %v235, 0.0
    %v237 = vadd.f32 %v236, 1e-05
    %v238 = vrsqrt.pop %v237
    %v239 = vmul.f32 %v238, %v237
    %v240 = vmul.f32 %v239, %v238
    %v241 = vmul.f32 0.5, %v240
    %v242 = vsub.f32 1.5, %v241
    %v243 = vmul.f32 %v238, %v242
    %vm244 = vweird.f32 %v237
    %vm245 = vweird.f32 %v238
    %vm246 = vmor %vm244, %vm245
    %v247 = vsel %vm246, %v238, %v243
    %v248 = vmul.f32 %v209, %v247
    %v249 = vmul.f32 %v225, %v248
    %v250 = vsub.f32 %v210, %v249
    %v252 = vperm.slane %v248, 0
    %v254 = vmul.f32 %v211, %v252
    %v256 = vperm.slane %v250, 0
    %v258 = vadd.f32 %v254, %v256
    %v259 = vpack.c.bf16 %v258, %v258
    %v260 = vld [vmem:[#allocation7] sm:$0xf]
    %v261 = vld [vmem:[#allocation7 + $0x4] sm:$0xf]
    %v262 = vld [vmem:[#allocation7 + $0x8] sm:$0xf]
    %v263 = vld [vmem:[#allocation7 + $0xc] sm:$0xf]
    %v264 = vld [vmem:[#allocation7 + $0x10] sm:$0xf]
    %v265 = vld [vmem:[#allocation7 + $0x14] sm:$0xf]
    %v266 = vld [vmem:[#allocation7 + $0x18] sm:$0xf]
    %v267 = vld [vmem:[#allocation7 + $0x1c] sm:$0xf]
    %v268 = vld [vmem:[#allocation7 + $0x20] sm:$0xf]
    %v269 = vld [vmem:[#allocation7 + $0x24] sm:$0xf]
    %v270 = vld [vmem:[#allocation7 + $0x28] sm:$0xf]
    %v271 = vld [vmem:[#allocation7 + $0x2c] sm:$0xf]
    %v272 = vld [vmem:[#allocation7 + $0x30] sm:$0xf]
    %v273 = vld [vmem:[#allocation7 + $0x34] sm:$0xf]
    %v274 = vld [vmem:[#allocation7 + $0x38] sm:$0xf]
    %v275 = vld [vmem:[#allocation7 + $0x3c] sm:$0xf]
    %v276 = vld [vmem:[%s6] sm:$0x1]
    %v278 = vperm.slane %v276, 0
    %v296 = vunpack.c.l.b16 %v260
    %v297 = vunpack.c.l.b16 %v261
    %v298 = vunpack.c.l.b16 %v262
    %v299 = vunpack.c.l.b16 %v263
    %v300 = vunpack.c.l.b16 %v264
    %v301 = vunpack.c.l.b16 %v265
    %v302 = vunpack.c.l.b16 %v266
    %v303 = vunpack.c.l.b16 %v267
    %v304 = vunpack.c.l.b16 %v268
    %v305 = vunpack.c.l.b16 %v269
    %v306 = vunpack.c.l.b16 %v270
    %v307 = vunpack.c.l.b16 %v271
    %v308 = vunpack.c.l.b16 %v272
    %v309 = vunpack.c.l.b16 %v273
    %v310 = vunpack.c.l.b16 %v274
    %v311 = vunpack.c.l.b16 %v275
    %v312 = vpack.c.b16 %v297, %v296
    %v313 = vpack.c.b16 %v299, %v298
    %v314 = vpack.c.b16 %v301, %v300
    %v315 = vpack.c.b16 %v303, %v302
    %v316 = vpack.c.b16 %v305, %v304
    %v317 = vpack.c.b16 %v307, %v306
    %v318 = vpack.c.b16 %v309, %v308
    %v319 = vpack.c.b16 %v311, %v310
    %328 = vmatpush.bf16.msra.mxu0 %v319
    %329 = vmatpush.bf16.msra.mxu0 %v318
    %330 = vmatpush.bf16.msra.mxu0 %v317
    %331 = vmatpush.bf16.msra.mxu0 %v316
    %332 = vmatpush.bf16.msra.mxu0 %v315
    %333 = vmatpush.bf16.msra.mxu0 %v314
    %334 = vmatpush.bf16.msra.mxu0 %v313
    %335 = vmatpush.bf16.msra.mxu0 %v312
    %336 = vmatmul.bf16.gmra.mxu0 %v259
    %v337 = vpop.f32.mrf.mxu0
    %v338 = vadd.f32 %v278, %v337
    %v339 = vpop.f32.mrf.mxu0
    %340 = vdwg.mxu0
    %v341 = vld [vmem:[%s7] sm:$0x1]
    %v342 = vld [vmem:[%s8] sm:$0x1]
    %v343 = vmax.f32 %v338, 0.0
    %v344 = vrot.slane %v343, 4
    %v345 = vadd.f32 %v343, %v344
    %v346 = vrot.slane %v345, 2
    %v347 = vadd.f32 %v345, %v346
    %v348 = vrot.slane %v347, 1
    %v349 = vadd.f32 %v347, %v348
    %v350 = vmul.f32 %v349, %v224
    %v351 = vmul.f32 %v343, %v343
    %v352 = vrot.slane %v351, 4
    %v353 = vadd.f32 %v351, %v352
    %v354 = vrot.slane %v353, 2
    %v355 = vadd.f32 %v353, %v354
    %v356 = vrot.slane %v355, 1
    %v357 = vadd.f32 %v355, %v356
    %v358 = vmul.f32 %v357, %v224
    %v359 = vmul.f32 %v350, %v350
    %v360 = vsub.f32 %v358, %v359
    %v361 = vmax.f32 %v360, 0.0
    %v362 = vadd.f32 %v361, 1e-05
    %v363 = vrsqrt.pop %v362
    %v364 = vmul.f32 %v363, %v362
    %v365 = vmul.f32 %v364, %v363
    %v366 = vmul.f32 0.5, %v365
    %v367 = vsub.f32 1.5, %v366
    %v368 = vmul.f32 %v363, %v367
    %vm369 = vweird.f32 %v362
    %vm370 = vweird.f32 %v363
    %vm371 = vmor %vm369, %vm370
    %v372 = vsel %vm371, %v363, %v368
    %v373 = vmul.f32 %v341, %v372
    %v374 = vmul.f32 %v350, %v373
    %v375 = vsub.f32 %v342, %v374
    %v377 = vperm.slane %v373, 0
    %v379 = vmul.f32 %v343, %v377
    %v381 = vperm.slane %v375, 0
    %v383 = vadd.f32 %v379, %v381
    %v384 = vpack.c.bf16 %v383, %v383
    %v385 = vld [vmem:[#allocation8] sm:$0xf]
    %v386 = vld [vmem:[#allocation8 + $0x4] sm:$0xf]
    %v387 = vld [vmem:[#allocation8 + $0x8] sm:$0xf]
    %v388 = vld [vmem:[#allocation8 + $0xc] sm:$0xf]
    %v389 = vld [vmem:[#allocation8 + $0x10] sm:$0xf]
    %v390 = vld [vmem:[#allocation8 + $0x14] sm:$0xf]
    %v391 = vld [vmem:[#allocation8 + $0x18] sm:$0xf]
    %v392 = vld [vmem:[#allocation8 + $0x1c] sm:$0xf]
    %v393 = vld [vmem:[#allocation8 + $0x20] sm:$0xf]
    %v394 = vld [vmem:[#allocation8 + $0x24] sm:$0xf]
    %v395 = vld [vmem:[#allocation8 + $0x28] sm:$0xf]
    %v396 = vld [vmem:[#allocation8 + $0x2c] sm:$0xf]
    %v397 = vld [vmem:[#allocation8 + $0x30] sm:$0xf]
    %v398 = vld [vmem:[#allocation8 + $0x34] sm:$0xf]
    %v399 = vld [vmem:[#allocation8 + $0x38] sm:$0xf]
    %v400 = vld [vmem:[#allocation8 + $0x3c] sm:$0xf]
    %v401 = vld [vmem:[%s10] sm:$0x1]
    %v403 = vperm.slane %v401, 0
    %v421 = vunpack.c.l.b16 %v385
    %v422 = vunpack.c.l.b16 %v386
    %v423 = vunpack.c.l.b16 %v387
    %v424 = vunpack.c.l.b16 %v388
    %v425 = vunpack.c.l.b16 %v389
    %v426 = vunpack.c.l.b16 %v390
    %v427 = vunpack.c.l.b16 %v391
    %v428 = vunpack.c.l.b16 %v392
    %v429 = vunpack.c.l.b16 %v393
    %v430 = vunpack.c.l.b16 %v394
    %v431 = vunpack.c.l.b16 %v395
    %v432 = vunpack.c.l.b16 %v396
    %v433 = vunpack.c.l.b16 %v397
    %v434 = vunpack.c.l.b16 %v398
    %v435 = vunpack.c.l.b16 %v399
    %v436 = vunpack.c.l.b16 %v400
    %v437 = vpack.c.b16 %v422, %v421
    %v438 = vpack.c.b16 %v424, %v423
    %v439 = vpack.c.b16 %v426, %v425
    %v440 = vpack.c.b16 %v428, %v427
    %v441 = vpack.c.b16 %v430, %v429
    %v442 = vpack.c.b16 %v432, %v431
    %v443 = vpack.c.b16 %v434, %v433
    %v444 = vpack.c.b16 %v436, %v435
    %453 = vmatpush.bf16.msra.mxu0 %v444
    %454 = vmatpush.bf16.msra.mxu0 %v443
    %455 = vmatpush.bf16.msra.mxu0 %v442
    %456 = vmatpush.bf16.msra.mxu0 %v441
    %457 = vmatpush.bf16.msra.mxu0 %v440
    %458 = vmatpush.bf16.msra.mxu0 %v439
    %459 = vmatpush.bf16.msra.mxu0 %v438
    %460 = vmatpush.bf16.msra.mxu0 %v437
    %461 = vmatmul.bf16.gmra.mxu0 %v384
    %v462 = vpop.f32.mrf.mxu0
    %v463 = vadd.f32 %v403, %v462
    %v464 = vpop.f32.mrf.mxu0
    %465 = vdwg.mxu0
    %v466 = vld [vmem:[%s11] sm:$0x1]
    %v467 = vld [vmem:[%s12] sm:$0x1]
    %v468 = vmax.f32 %v463, 0.0
    %v469 = vrot.slane %v468, 4
    %v470 = vadd.f32 %v468, %v469
    %v471 = vrot.slane %v470, 2
    %v472 = vadd.f32 %v470, %v471
    %v473 = vrot.slane %v472, 1
    %v474 = vadd.f32 %v472, %v473
    %v475 = vmul.f32 %v474, %v224
    %v476 = vmul.f32 %v468, %v468
    %v477 = vrot.slane %v476, 4
    %v478 = vadd.f32 %v476, %v477
    %v479 = vrot.slane %v478, 2
    %v480 = vadd.f32 %v478, %v479
    %v481 = vrot.slane %v480, 1
    %v482 = vadd.f32 %v480, %v481
    %v483 = vmul.f32 %v482, %v224
    %v484 = vmul.f32 %v475, %v475
    %v485 = vsub.f32 %v483, %v484
    %v486 = vmax.f32 %v485, 0.0
    %v487 = vadd.f32 %v486, 1e-05
    %v488 = vrsqrt.pop %v487
    %v489 = vmul.f32 %v488, %v487
    %v490 = vmul.f32 %v489, %v488
    %v491 = vmul.f32 0.5, %v490
    %v492 = vsub.f32 1.5, %v491
    %v493 = vmul.f32 %v488, %v492
    %vm494 = vweird.f32 %v487
    %vm495 = vweird.f32 %v488
    %vm496 = vmor %vm494, %vm495
    %v497 = vsel %vm496, %v488, %v493
    %v498 = vmul.f32 %v466, %v497
    %v499 = vmul.f32 %v475, %v498
    %v500 = vsub.f32 %v467, %v499
    %v502 = vperm.slane %v498, 0
    %v504 = vmul.f32 %v468, %v502
    %v506 = vperm.slane %v500, 0
    %v508 = vadd.f32 %v504, %v506
    %v509 = vpack.c.bf16 %v508, %v508
    %v510 = vld [vmem:[#allocation10] sm:$0xf]
    %v511 = vld [vmem:[#allocation10 + $0x4] sm:$0xf]
    %v512 = vld [vmem:[#allocation10 + $0x8] sm:$0xf]
    %v513 = vld [vmem:[#allocation10 + $0xc] sm:$0xf]
    %v514 = vld [vmem:[#allocation10 + $0x10] sm:$0xf]
    %v515 = vld [vmem:[#allocation10 + $0x14] sm:$0xf]
    %v516 = vld [vmem:[#allocation10 + $0x18] sm:$0xf]
    %v517 = vld [vmem:[#allocation10 + $0x1c] sm:$0xf]
    %v518 = vld [vmem:[#allocation10 + $0x20] sm:$0xf]
    %v519 = vld [vmem:[#allocation10 + $0x24] sm:$0xf]
    %v520 = vld [vmem:[#allocation10 + $0x28] sm:$0xf]
    %v521 = vld [vmem:[#allocation10 + $0x2c] sm:$0xf]
    %v522 = vld [vmem:[#allocation10 + $0x30] sm:$0xf]
    %v523 = vld [vmem:[#allocation10 + $0x34] sm:$0xf]
    %v524 = vld [vmem:[#allocation10 + $0x38] sm:$0xf]
    %v525 = vld [vmem:[#allocation10 + $0x3c] sm:$0xf]
    %v526 = vld [vmem:[%s14] sm:$0x1]
    %v528 = vperm.slane %v526, 0
    %v546 = vunpack.c.l.b16 %v510
    %v547 = vunpack.c.l.b16 %v511
    %v548 = vunpack.c.l.b16 %v512
    %v549 = vunpack.c.l.b16 %v513
    %v550 = vunpack.c.l.b16 %v514
    %v551 = vunpack.c.l.b16 %v515
    %v552 = vunpack.c.l.b16 %v516
    %v553 = vunpack.c.l.b16 %v517
    %v554 = vunpack.c.l.b16 %v518
    %v555 = vunpack.c.l.b16 %v519
    %v556 = vunpack.c.l.b16 %v520
    %v557 = vunpack.c.l.b16 %v521
    %v558 = vunpack.c.l.b16 %v522
    %v559 = vunpack.c.l.b16 %v523
    %v560 = vunpack.c.l.b16 %v524
    %v561 = vunpack.c.l.b16 %v525
    %v562 = vpack.c.b16 %v547, %v546
    %v563 = vpack.c.b16 %v549, %v548
    %v564 = vpack.c.b16 %v551, %v550
    %v565 = vpack.c.b16 %v553, %v552
    %v566 = vpack.c.b16 %v555, %v554
    %v567 = vpack.c.b16 %v557, %v556
    %v568 = vpack.c.b16 %v559, %v558
    %v569 = vpack.c.b16 %v561, %v560
    %578 = vmatpush.bf16.msra.mxu0 %v569
    %579 = vmatpush.bf16.msra.mxu0 %v568
    %580 = vmatpush.bf16.msra.mxu0 %v567
    %581 = vmatpush.bf16.msra.mxu0 %v566
    %582 = vmatpush.bf16.msra.mxu0 %v565
    %583 = vmatpush.bf16.msra.mxu0 %v564
    %584 = vmatpush.bf16.msra.mxu0 %v563
    %585 = vmatpush.bf16.msra.mxu0 %v562
    %586 = vmatmul.bf16.gmra.mxu0 %v509
    %v587 = vpop.f32.mrf.mxu0
    %v588 = vadd.f32 %v528, %v587
    %v589 = vpop.f32.mrf.mxu0
    %590 = vdwg.mxu0
    %591 = vst [vmem:[#allocation11] sm:$0xff] %v588
    // Predicated region
    $region82: #{tpu_custom_call.1} parent=1 // pred_check
      _
    $region83: #{tpu_custom_call.1} parent=1 // pred_check_branch
      %593 = sbr.rel (0) target = $region85
    $region84: #{tpu_custom_call.1} parent=1 // pred_region
      %595 = vsyncadd [#allocation4], 0
      %s597 = sshll.u32 [#allocation11], 4
      %s598 = int_to_ptr.vmem [resolvable:$true] %s597
      %s599 = sshll.u32 %s15, 4
      %s600 = int_to_ptr.hbm [resolvable:$true] %s599
      %602 = dma.vmem_to_hbm [thread:$0]  %s598, 128, %s600, [#allocation4]
    $region85: #{tpu_custom_call.1} parent=1 // pred_fallthru
      _
    // Predicated region
    $region86: #{tpu_custom_call.1} parent=1 // pred_check
      _
    $region87: #{tpu_custom_call.1} parent=1 // pred_check_branch
      %604 = sbr.rel (0) target = $region89
    $region88: #{tpu_custom_call.1} parent=1 // pred_region
      %606 = dma.done [#allocation4], 128
    $region89: #{tpu_custom_call.1} parent=1 // pred_fallthru
      _
    %607 = vsyncpa [#allocation3], 1
    %608 = vsyncpa [#allocation6], 1
    %609 = vsyncpa [#allocation9], 1
    %610 = vsyncpa [#allocation4], 1

</llo_original>
